<compile_context>
chip_gen: v5e
topology: v5e:2x2
jax: 0.10.0
libtpu: 0.0.40
codegen_flags: <defaults>
</compile_context>

<pallas_src>
import functools

import jax
import jax.numpy as jnp
from jax import lax
from jax.experimental import pallas as pl
from jax.experimental.pallas import tpu as pltpu

_EPS = 1e-12  # matches torch F.normalize default eps

# Double-buffered block budget.  Kept under ~48 MiB so the same tiling is safe on
# v7x (64 MiB physical VMEM per TensorCore) as well as v5e/v6e (128 MiB).
_DEFAULT_TILE_VMEM_BYTES = 44 * 1024 * 1024
_MAX_TM = 1024
_MAX_TN = 1024
_MAX_TK = 2048


def _round_up(v, m):
    return ((v + m - 1) // m) * m


def _sublane_multiple(dtype):
    itemsize = jnp.dtype(dtype).itemsize
    if itemsize >= 4:
        return 8
    if itemsize == 2:
        return 16
    return 32


def _divisor_tiles(total, unit, cap):
    """Multiples of `unit` that divide `total` (a multiple of `unit`), <= cap, descending."""
    q = total // unit
    divs = set()
    d = 1
    while d * d <= q:
        if q % d == 0:
            divs.add(d)
            divs.add(q // d)
        d += 1
    tiles = sorted((d * unit for d in divs if d * unit <= cap), reverse=True)
    return tiles if tiles else [unit]


def _select_tiles(n_al, k_al, m_al, xsz, wsz, osz, sub, budget):
    """Pick (tm, tk, tn, single_k) so double-buffered blocks fit `budget` bytes."""

    def footprint(tm, tk, tn, single_k):
        buf = 2 * (tm * tk * xsz + tk * tn * wsz + tm * tn * osz)
        buf += 2 * (tm + tn) * 4            # inv_x / inv_w blocks
        if not single_k:
            buf += tm * tn * 4              # f32 accumulator scratch
        return buf

    tm = min(_MAX_TM, n_al)
    tn = min(_MAX_TN, m_al)

    # Keep both v7x TensorCores busy: if a big problem would be a single output
    # tile, split the larger output dim so the parallel grid has extent >= 2.
    if tm == n_al and tn == m_al and n_al * m_al >= 512 * 512:
        if tn >= 256:
            tn = _round_up(tn // 2, 128)
        elif tm >= 2 * sub:
            tm = _round_up(tm // 2, sub)

    # Small-K fast path: full K in one shot, no reduction grid axis.
    if footprint(tm, k_al, tn, True) <= budget:
        return tm, k_al, tn, True

    # Multi-K: tk must divide the 128-aligned K so K never gets extra padding.
    for tk in _divisor_tiles(k_al, 128, _MAX_TK):
        if footprint(tm, tk, tn, False) <= budget:
            return tm, tk, tn, False

    tk = 128
    while footprint(tm, tk, tn, False) > budget and (tm > sub or tn > 128):
        if tn >= tm and tn > 128:
            tn = max(128, _round_up(tn // 2, 128))
        elif tm > sub:
            tm = max(sub, _round_up(tm // 2, sub))
        else:
            break
    return tm, tk, tn, False


def _normed_linear_kernel_acc(x_ref, w_ref, inv_x_ref, inv_w_ref, o_ref, acc_ref):
    """Grid (i, j, k): MXU accumulation over K, scaling epilogue at the last k."""
    k = pl.program_id(2)

    @pl.when(k == 0)
    def _init():
        acc_ref[...] = jnp.zeros_like(acc_ref)

    acc_ref[...] += jnp.dot(x_ref[...], w_ref[...],
                            preferred_element_type=jnp.float32)

    @pl.when(k == pl.num_programs(2) - 1)
    def _finalize():
        o_ref[...] = (acc_ref[...] * inv_x_ref[...] * inv_w_ref[...]
                      ).astype(o_ref.dtype)


def _normed_linear_kernel_single(x_ref, w_ref, inv_x_ref, inv_w_ref, o_ref):
    """Grid (i, j): full K per step — no accumulator scratch, no init/finalize."""
    acc = jnp.dot(x_ref[...], w_ref[...], preferred_element_type=jnp.float32)
    o_ref[...] = (acc * inv_x_ref[...] * inv_w_ref[...]).astype(o_ref.dtype)


@functools.partial(jax.jit, static_argnames=("matmul_dtype", "max_tile_vmem_bytes"))
def normed_linear(x, weight, *, matmul_dtype=None, max_tile_vmem_bytes=None):
    """out = F.normalize(x, dim=1) @ F.normalize(weight, dim=0).

    matmul_dtype: optional dtype (e.g. jnp.bfloat16) the MXU operands are cast to;
    the matmul still accumulates in f32 and the L2 norms are computed from the
    original-precision values.
    """
    n, in_f = x.shape
    in_f_w, out_f = weight.shape
    assert in_f == in_f_w, (in_f, in_f_w)
    out_dtype = x.dtype

    # Row / column inverse L2 norms, computed once (not per output tile).
    # rsqrt(max(ss, eps^2)) == 1 / max(||.||_2, eps)  -> matches F.normalize.
    x32 = x.astype(jnp.float32)
    w32 = weight.astype(jnp.float32)
    inv_x = lax.rsqrt(jnp.maximum(jnp.sum(x32 * x32, axis=1, keepdims=True),
                                  _EPS * _EPS))                       # (n, 1)
    inv_w = lax.rsqrt(jnp.maximum(jnp.sum(w32 * w32, axis=0, keepdims=True),
                                  _EPS * _EPS))                       # (1, out_f)

    x_in = x if matmul_dtype is None else x.astype(matmul_dtype)
    w_in = weight if matmul_dtype is None else weight.astype(matmul_dtype)
    xsz = jnp.dtype(x_in.dtype).itemsize
    wsz = jnp.dtype(w_in.dtype).itemsize
    osz = jnp.dtype(out_dtype).itemsize
    sub = max(_sublane_multiple(x_in.dtype), _sublane_multiple(out_dtype))

    n_al = _round_up(n, sub)
    k_al = _round_up(in_f, 128)     # K padded only to the lane width
    m_al = _round_up(out_f, 128)

    budget = (_DEFAULT_TILE_VMEM_BYTES if max_tile_vmem_bytes is None
              else int(max_tile_vmem_bytes))
    tm, tk, tn, single_k = _select_tiles(n_al, k_al, m_al, xsz, wsz, osz, sub,
                                         budget)

    n_pad = _round_up(n, tm)
    k_pad = k_al                    # tk divides k_al by construction
    m_pad = _round_up(out_f, tn)

    # Zero padding is exact: padded rows/cols contribute 0 to the dot product and
    # are sliced off below.  (In a real model, cache the padded/cast weight
    # outside the per-step hot path instead of re-padding each call.)
    def pad2(a, r, c):
        if r == a.shape[0] and c == a.shape[1]:
            return a
        return jnp.pad(a, ((0, r - a.shape[0]), (0, c - a.shape[1])))

    x_p = pad2(x_in, n_pad, k_pad)
    w_p = pad2(w_in, k_pad, m_pad)
    inv_x_p = pad2(inv_x, n_pad, 1)
    inv_w_p = pad2(inv_w, 1, m_pad)

    ni, nj, nk = n_pad // tm, m_pad // tn, k_pad // tk

    footprint = (2 * (tm * tk * xsz + tk * tn * wsz + tm * tn * osz)
                 + 2 * (tm + tn) * 4 + (0 if single_k else tm * tn * 4))
    vmem_limit = int(min(max(footprint + 8 * 1024 * 1024, 32 * 1024 * 1024),
                         56 * 1024 * 1024))

    cost = pl.CostEstimate(
        flops=2 * n_pad * m_pad * k_pad + 2 * n_pad * m_pad,
        transcendentals=0,
        bytes_accessed=(nj * n_pad * k_pad * xsz      # x re-streamed per j tile
                        + ni * k_pad * m_pad * wsz    # W re-streamed per i tile
                        + n_pad * m_pad * osz
                        + nj * nk * n_pad * 4 + ni * nk * m_pad * 4),
    )

    if single_k:
        grid = (ni, nj)
        in_specs = [
            pl.BlockSpec((tm, k_pad), lambda i, j: (i, 0)),
            pl.BlockSpec((k_pad, tn), lambda i, j: (0, j)),
            pl.BlockSpec((tm, 1), lambda i, j: (i, 0)),
            pl.BlockSpec((1, tn), lambda i, j: (0, j)),
        ]
        out_specs = pl.BlockSpec((tm, tn), lambda i, j: (i, j))
        scratch_shapes = ()
        kernel = _normed_linear_kernel_single
        semantics = ("parallel", "parallel")
    else:
        grid = (ni, nj, nk)
        in_specs = [
            pl.BlockSpec((tm, tk), lambda i, j, k: (i, k)),
            pl.BlockSpec((tk, tn), lambda i, j, k: (k, j)),
            pl.BlockSpec((tm, 1), lambda i, j, k: (i, 0)),
            pl.BlockSpec((1, tn), lambda i, j, k: (0, j)),
        ]
        out_specs = pl.BlockSpec((tm, tn), lambda i, j, k: (i, j))
        scratch_shapes = (pltpu.VMEM((tm, tn), jnp.float32),)
        kernel = _normed_linear_kernel_acc
        semantics = ("parallel", "parallel", "arbitrary")

    out_p = pl.pallas_call(
        kernel,
        out_shape=jax.ShapeDtypeStruct((n_pad, m_pad), out_dtype),
        grid_spec=pltpu.PrefetchScalarGridSpec(
            num_scalar_prefetch=0,
            grid=grid,
            in_specs=in_specs,
            out_specs=out_specs,
            scratch_shapes=scratch_shapes,
        ),
        compiler_params=pltpu.CompilerParams(
            dimension_semantics=semantics,
            vmem_limit_bytes=vmem_limit,
        ),
        cost_estimate=cost,
    )(x_p, w_p, inv_x_p, inv_w_p)

    return out_p[:n, :out_f]


def init_normed_linear_weight(key, in_features, out_features):
    """Replicates: uniform_(-1, 1).renorm_(2, 1, 1e-05).mul_(100000.0)."""
    w = jax.random.uniform(key, (in_features, out_features),
                           minval=-1.0, maxval=1.0, dtype=jnp.float32)
    # renorm_(p=2, dim=1, maxnorm=1e-5): clamp L2 norm of each column to 1e-5.
    col_norm = jnp.sqrt(jnp.sum(w * w, axis=0, keepdims=True))
    scale = jnp.where(col_norm > 1e-5, 1e-5 / (col_norm + 1e-7), 1.0)
    return w * scale * 1e5


def normed_linear_ref(x, weight):
    """Pure-JAX reference for correctness checking."""
    xn = x / jnp.maximum(jnp.sqrt(jnp.sum(x * x, axis=1, keepdims=True)), _EPS)
    wn = weight / jnp.maximum(
        jnp.sqrt(jnp.sum(weight * weight, axis=0, keepdims=True)), _EPS)
    return xn @ wn


if __name__ == "__main__":
    key = jax.random.PRNGKey(0)
    k_x, k_w = jax.random.split(key)

    batch, in_features, out_features = 8, 32, 16
    x = jax.random.normal(k_x, (batch, in_features), dtype=jnp.float32)
    weight = init_normed_linear_weight(k_w, in_features, out_features)

    # 1) f32, small-K fast path (single-shot K, 2-D parallel grid).
    out = jax.block_until_ready(normed_linear(x, weight))
    ref = normed_linear_ref(x, weight)
    assert out.shape == (batch, out_features), out.shape
    assert jnp.allclose(out, ref, atol=2e-5, rtol=1e-4), (
        float(jnp.max(jnp.abs(out - ref))))

    # 2) Multi-K accumulation path (force a small tile budget so the K grid axis
    #    and the f32 accumulator scratch are exercised).
    x2 = jax.random.normal(jax.random.PRNGKey(1), (64, 512), dtype=jnp.float32)
    w2 = init_normed_linear_weight(jax.random.PRNGKey(2), 512, 256)
    out2 = jax.block_until_ready(
        normed_linear(x2, w2, max_tile_vmem_bytes=512 * 1024))
    ref2 = normed_linear_ref(x2, w2)
    assert out2.shape == (64, 256), out2.shape
    assert jnp.allclose(out2, ref2, atol=2e-4, rtol=1e-3), (
        float(jnp.max(jnp.abs(out2 - ref2))))

    # 3) bf16 MXU path (operands cast to bf16, f32 accumulation, f32 norms).
    out3 = jax.block_until_ready(
        normed_linear(x2, w2, matmul_dtype=jnp.bfloat16))
    assert jnp.allclose(out3, ref2, atol=5e-2, rtol=5e-2), (
        float(jnp.max(jnp.abs(out3 - ref2))))

    print("KERNEL_OK")
</pallas_src>

<mosaic_0001>
module attributes {stable_mosaic.version = 11 : i64} {
  func.func @_normed_linear_kernel_single(%arg0: i32, %arg1: i32, %arg2: memref<8x128xf32, #tpu.memory_space<vmem>>, %arg3: memref<128x128xf32, #tpu.memory_space<vmem>>, %arg4: memref<8x1xf32, #tpu.memory_space<vmem>>, %arg5: memref<1x128xf32, #tpu.memory_space<vmem>>, %arg6: memref<8x128xf32, #tpu.memory_space<vmem>>) attributes {dimension_semantics = [#tpu.dimension_semantics<parallel>, #tpu.dimension_semantics<parallel>], iteration_bounds = array<i64: 1, 1>, scalar_prefetch = 0 : i64, scratch_operands = 0 : i64, tpu.core_type = #tpu.core_type<tc>, window_params = [{transform_indices = @transform_0, window_bounds = array<i64: 8, 128>}, {transform_indices = @transform_1, window_bounds = array<i64: 128, 128>}, {transform_indices = @transform_2, window_bounds = array<i64: 8, 1>}, {transform_indices = @transform_3, window_bounds = array<i64: 1, 128>}, {transform_indices = @transform_4, window_bounds = array<i64: 8, 128>}]} {
    %c0 = arith.constant 0 : index
    %c0_0 = arith.constant 0 : index
    %0 = vector.load %arg2[%c0, %c0_0] : memref<8x128xf32, #tpu.memory_space<vmem>>, vector<8x128xf32>
    %c0_1 = arith.constant 0 : index
    %c0_2 = arith.constant 0 : index
    %1 = vector.load %arg3[%c0_1, %c0_2] : memref<128x128xf32, #tpu.memory_space<vmem>>, vector<128x128xf32>
    %cst = arith.constant dense<0.000000e+00> : vector<8x128xf32>
    %2 = tpu.matmul %0, %1, %cst {dimension_numbers = #tpu.dot_dimension_numbers<[1], [0], [0], [1], [0, 0, 1, 1], [], []>} : vector<8x128xf32>, vector<128x128xf32>, vector<8x128xf32> -> vector<8x128xf32>
    %c0_3 = arith.constant 0 : index
    %c0_4 = arith.constant 0 : index
    %3 = vector.load %arg4[%c0_3, %c0_4] : memref<8x1xf32, #tpu.memory_space<vmem>>, vector<8x1xf32>
    %4 = vector.broadcast %3 : vector<8x1xf32> to vector<8x128xf32>
    %5 = arith.mulf %2, %4 : vector<8x128xf32>
    %c0_5 = arith.constant 0 : index
    %c0_6 = arith.constant 0 : index
    %6 = vector.load %arg5[%c0_5, %c0_6] : memref<1x128xf32, #tpu.memory_space<vmem>>, vector<1x128xf32>
    %7 = vector.broadcast %6 : vector<1x128xf32> to vector<8x128xf32>
    %8 = arith.mulf %5, %7 : vector<8x128xf32>
    %c0_7 = arith.constant 0 : index
    %c0_8 = arith.constant 0 : index
    %9 = vector.load %arg6[%c0_7, %c0_8] : memref<8x128xf32, #tpu.memory_space<vmem>>, vector<8x128xf32>
    tpu.vector_store %arg6[%c0_7, %c0_8], %8 {strides = array<i32>} : memref<8x128xf32, #tpu.memory_space<vmem>>, vector<8x128xf32>,
    return
  }
  func.func @transform_0(%arg0: i32, %arg1: i32) -> (i32, i32) {
    %c0_i32 = arith.constant 0 : i32
    %c0_i32_0 = arith.constant 0 : i32
    return %arg0, %c0_i32 : i32, i32
  }
  func.func @transform_1(%arg0: i32, %arg1: i32) -> (i32, i32) {
    %c0_i32 = arith.constant 0 : i32
    %c0_i32_0 = arith.constant 0 : i32
    return %c0_i32, %arg1 : i32, i32
  }
  func.func @transform_2(%arg0: i32, %arg1: i32) -> (i32, i32) {
    %c0_i32 = arith.constant 0 : i32
    %c0_i32_0 = arith.constant 0 : i32
    return %arg0, %c0_i32 : i32, i32
  }
  func.func @transform_3(%arg0: i32, %arg1: i32) -> (i32, i32) {
    %c0_i32 = arith.constant 0 : i32
    %c0_i32_0 = arith.constant 0 : i32
    return %c0_i32, %arg1 : i32, i32
  }
  func.func @transform_4(%arg0: i32, %arg1: i32) -> (i32, i32) {
    %c0_i32 = arith.constant 0 : i32
    return %arg0, %arg1 : i32, i32
  }
}

</mosaic_0001>

<llo_original>
// kernel: normed_linear.1
$region0: #{normed_linear.1}
  #allocation0 [shape = 'u32[]', space=smem, size = 0x4, offset = 0x4, fixed_abs, tag = 'smem constant byte address 0x4 - core index']
  #allocation1 [shape = 'u32[72,128]{1,0:T(1,128)}', space=vmem, size = 0x9000, scoped, tag = 'internal scratch']
  %s0 = inlined_call_operand.vmem [shape: f32[8,128], index: 0, kind: input, shape index: {}]
  %s1 = inlined_call_operand.vmem [shape: f32[128,128], index: 1, kind: input, shape index: {}]
  %s2 = inlined_call_operand.vmem [shape: f32[8,1], index: 2, kind: input, shape index: {}]
  %s3 = inlined_call_operand.vmem [shape: f32[1,128], index: 3, kind: input, shape index: {}]
  %s4 = inlined_call_operand.hbm [shape: f32[8,128], index: 4, kind: output, shape index: {}]
  %s5 = sld [smem:[#allocation0]]
  $region26: #{normed_linear.1} parent=0
    _
  %s7 = ssub.s32 1, %s5
  %s8 = scalar_select 0, %s7, %s5
  $region1: #{normed_linear.1} parent=0
    #allocation2 [shape = 'u8[4096]{0}', space=vmem, size = 0x1000, scoped, tag = 'output window, operand 0, single buffered']
    #allocation3 [shape = 's32[1]{0}', space=sflag, size = 0x4, scoped, tag = 'scoped memory for normed_linear.1']
    %9 = vsyncpa [#allocation3], 0
    // Predicated region
    $region2: #{normed_linear.1} parent=1 // pred_check
      _
    $region3: #{normed_linear.1} parent=1 // pred_check_branch
      %11 = sbr.rel (0) target = $region5
    $region4: #{normed_linear.1} parent=1 // pred_region
      _
    $region5: #{normed_linear.1} parent=1 // pred_fallthru
      _
    // Predicated region
    $region6: #{normed_linear.1} parent=1 // pred_check
      _
    $region7: #{normed_linear.1} parent=1 // pred_check_branch
      %13 = sbr.rel (0) target = $region9
    $region8: #{normed_linear.1} parent=1 // pred_region
      _
    $region9: #{normed_linear.1} parent=1 // pred_fallthru
      _
    // Predicated region
    $region10: #{normed_linear.1} parent=1 // pred_check
      _
    $region11: #{normed_linear.1} parent=1 // pred_check_branch
      %15 = sbr.rel (0) target = $region13
    $region12: #{normed_linear.1} parent=1 // pred_region
      _
    $region13: #{normed_linear.1} parent=1 // pred_fallthru
      _
    // Predicated region
    $region14: #{normed_linear.1} parent=1 // pred_check
      _
    $region15: #{normed_linear.1} parent=1 // pred_check_branch
      %17 = sbr.rel (0) target = $region17
    $region16: #{normed_linear.1} parent=1 // pred_region
      _
    $region17: #{normed_linear.1} parent=1 // pred_fallthru
      _
    %v18 = vld [vmem:[%s0] sm:$0xff]
    %v19 = vld [vmem:[%s1] sm:$0xff]
    %v20 = vld [vmem:[%s1 + $0x8] sm:$0xff]
    %v21 = vld [vmem:[%s1 + $0x10] sm:$0xff]
    %v22 = vld [vmem:[%s1 + $0x18] sm:$0xff]
    %v23 = vld [vmem:[%s1 + $0x20] sm:$0xff]
    %v24 = vld [vmem:[%s1 + $0x28] sm:$0xff]
    %v25 = vld [vmem:[%s1 + $0x30] sm:$0xff]
    %v26 = vld [vmem:[%s1 + $0x38] sm:$0xff]
    %v27 = vld [vmem:[%s1 + $0x40] sm:$0xff]
    %v28 = vld [vmem:[%s1 + $0x48] sm:$0xff]
    %v29 = vld [vmem:[%s1 + $0x50] sm:$0xff]
    %v30 = vld [vmem:[%s1 + $0x58] sm:$0xff]
    %v31 = vld [vmem:[%s1 + $0x60] sm:$0xff]
    %v32 = vld [vmem:[%s1 + $0x68] sm:$0xff]
    %v33 = vld [vmem:[%s1 + $0x70] sm:$0xff]
    %v34 = vld [vmem:[%s1 + $0x78] sm:$0xff]
    %35 = vmatpush.msra.mxu0 %v34
    %36 = vmatpush.msra.mxu0 %v33
    %37 = vmatpush.msra.mxu0 %v32
    %38 = vmatpush.msra.mxu0 %v31
    %39 = vmatpush.msra.mxu0 %v30
    %40 = vmatpush.msra.mxu0 %v29
    %41 = vmatpush.msra.mxu0 %v28
    %42 = vmatpush.msra.mxu0 %v27
    %43 = vmatpush.msra.mxu0 %v26
    %44 = vmatpush.msra.mxu0 %v25
    %45 = vmatpush.msra.mxu0 %v24
    %46 = vmatpush.msra.mxu0 %v23
    %47 = vmatpush.msra.mxu0 %v22
    %48 = vmatpush.msra.mxu0 %v21
    %49 = vmatpush.msra.mxu0 %v20
    %50 = vmatpush.msra.mxu0 %v19
    %51 = vmatmul.f32.gmra.mxu0 %v18
    %v52 = vpop.f32.mrf.mxu0
    %v53 = vadd.f32 0.0, %v52
    %54 = vdwg.mxu0
    %v55 = vld [vmem:[%s2] sm:$0xff]
    %57 = vset.pattern.permute.xlu0 0
    %58 = vperm.xlu0 %57, %v55
    %v59 = vpop.permute.xlu0 %58
    %v61 = vmul.f32 %v53, %v59
    %v62 = vld [vmem:[%s3] sm:$0x1]
    %v64 = vperm.slane %v62, 0
    %v66 = vmul.f32 %v61, %v64
    %67 = vst [vmem:[#allocation2] sm:$0xff] %v66
    // Predicated region
    $region18: #{normed_linear.1} parent=1 // pred_check
      _
    $region19: #{normed_linear.1} parent=1 // pred_check_branch
      %69 = sbr.rel (0) target = $region21
    $region20: #{normed_linear.1} parent=1 // pred_region
      %71 = vsyncadd [#allocation3], 0
      %s73 = sshll.u32 [#allocation2], 4
      %s74 = int_to_ptr.vmem [resolvable:$true] %s73
      %s75 = sshll.u32 %s4, 4
      %s76 = int_to_ptr.hbm [resolvable:$true] %s75
      %78 = dma.vmem_to_hbm [thread:$0]  %s74, 128, %s76, [#allocation3]
    $region21: #{normed_linear.1} parent=1 // pred_fallthru
      _
    // Predicated region
    $region22: #{normed_linear.1} parent=1 // pred_check
      _
    $region23: #{normed_linear.1} parent=1 // pred_check_branch
      %80 = sbr.rel (0) target = $region25
    $region24: #{normed_linear.1} parent=1 // pred_region
      %82 = dma.done [#allocation3], 128
    $region25: #{normed_linear.1} parent=1 // pred_fallthru
      _
    %83 = vsyncpa [#allocation3], 1

</llo_original>
